<compile_context>
chip_gen: v6e
topology: v6e:2x2x1
jax: 0.10.0
libtpu: 0.0.40
codegen_flags: <defaults>
</compile_context>

<pallas_src>
from functools import lru_cache

import jax
import jax.numpy as jnp
from jax.experimental import pallas as pl
from jax.experimental.pallas import tpu as pltpu


def _normalize_kernel(img_ref, mean_ref, inv_std_ref, out_ref):
    # img_ref: (TH, LD) in the original input dtype; mean/inv_std: (1, LD) f32.
    x = img_ref[...].astype(jnp.float32)
    out_ref[...] = ((x - mean_ref[...]) * inv_std_ref[...]).astype(out_ref.dtype)


def _vmem_budget():
    """Generation-aware (per-step byte budget, vmem_limit_bytes)."""
    try:
        vmem_cap = int(pltpu.get_tpu_info().vmem_capacity_bytes)
    except Exception:
        vmem_cap = 64 << 20  # conservative: v7x per-TensorCore VMEM
    # One (input + output) block per step ~= VMEM/8 -> 8 MiB on v7x, 16 MiB on
    # v5e/v6e.  Double-buffered that is ~VMEM/4, comfortably within the limit.
    target_step = vmem_cap // 8
    vmem_limit = min(vmem_cap, 4 * target_step)
    return target_step, vmem_limit


def _choose_tile_rows(n_rows, lane_dim, in_itemsize, out_itemsize,
                      target_step_bytes, min_blocks=4):
    """Pick the block height (rows per grid step)."""
    per_row_bytes = lane_dim * (in_itemsize + out_itemsize)
    # Budget cap: one (input + output) block per step within the byte budget.
    th = max(1, target_step_bytes // per_row_bytes)
    # Never collapse to a single step on non-trivial images: keep >= min_blocks
    # grid steps so v7x's two TensorCores both get work and DMA overlaps compute.
    if n_rows >= min_blocks * 32:
        th = min(th, -(-n_rows // min_blocks))
    if th >= n_rows:
        return n_rows  # tiny image: whole thing in one block
    # Balance blocks (avoid a near-empty tail), then align the block height:
    # 32 sublanes for sub-32-bit inputs (packed layout), 8 otherwise.
    n_steps = -(-n_rows // th)
    th = -(-n_rows // n_steps)
    align = 32 if in_itemsize < 4 else 8
    th = ((th + align - 1) // align) * align
    return min(th, n_rows)


@lru_cache(maxsize=16)
def _channel_constants(mean, std, lane_dim):
    """Cached (1, lane_dim) f32 rows of per-channel mean and 1/std."""
    c = len(mean)
    mean_c = jnp.asarray(mean, dtype=jnp.float32)
    inv_std_c = 1.0 / jnp.asarray(std, dtype=jnp.float32)
    mean_row = jnp.tile(mean_c, lane_dim // c).reshape(1, lane_dim)
    inv_std_row = jnp.tile(inv_std_c, lane_dim // c).reshape(1, lane_dim)
    return mean_row, inv_std_row


def normalize(image_hwc, label, mean, std, out_dtype=jnp.float32):
    """image_hwc: (H, W, C) int or float; mean, std: length-C sequences.

    out_dtype: keep jnp.float32 for exact PyTorch parity; pass jnp.bfloat16 to
    cut output HBM traffic ~40% if the consumer tolerates bf16.
    """
    H, W, C = image_hwc.shape
    N = H * W * C
    WC = W * C

    # Lane-dense 2-D view: make the last dim a multiple of 128 whenever possible
    # so stores are unmasked full-vreg vst.
    if WC % 128 == 0:
        n_rows, lane_dim = H, WC
    elif C == 3 and N % 384 == 0:
        lane_dim = 384          # 3*128: multiple of 128 AND of C, so the
        n_rows = N // lane_dim  # per-channel constants row tiles exactly.
    else:
        # Fallback: masked partial stores, still correct.
        n_rows, lane_dim = H, WC

    img2d = image_hwc.reshape(n_rows, lane_dim)  # row-major reshape, no copy pass
    mean_row, inv_std_row = _channel_constants(
        tuple(float(m) for m in mean), tuple(float(s) for s in std), lane_dim
    )

    in_itemsize = jnp.dtype(image_hwc.dtype).itemsize
    out_itemsize = jnp.dtype(out_dtype).itemsize
    target_step, vmem_limit = _vmem_budget()
    TH = _choose_tile_rows(n_rows, lane_dim, in_itemsize, out_itemsize, target_step)
    grid = (pl.cdiv(n_rows, TH),)

    cost = pl.CostEstimate(
        flops=2 * N,
        transcendentals=0,
        bytes_accessed=N * (in_itemsize + out_itemsize) + 2 * lane_dim * 4,
    )

    out2d = pl.pallas_call(
        _normalize_kernel,
        out_shape=jax.ShapeDtypeStruct((n_rows, lane_dim), out_dtype),
        grid=grid,
        in_specs=[
            pl.BlockSpec((TH, lane_dim), lambda i: (i, 0)),
            pl.BlockSpec((1, lane_dim), lambda i: (0, 0)),
            pl.BlockSpec((1, lane_dim), lambda i: (0, 0)),
        ],
        out_specs=pl.BlockSpec((TH, lane_dim), lambda i: (i, 0)),
        compiler_params=pltpu.CompilerParams(
            # TODO(synk): if a v7x profile shows "parallel" does not shard the H
            # grid across both TensorCores, switch to pltpu.CORE_PARALLEL here.
            dimension_semantics=("parallel",),
            vmem_limit_bytes=vmem_limit,
        ),
        cost_estimate=cost,
    )(img2d, mean_row, inv_std_row)

    out_hwc = out2d.reshape(H, W, C)
    # label is returned unchanged, exactly like the PyTorch module.
    return out_hwc, label


if __name__ == "__main__":
    key = jax.random.PRNGKey(0)
    k_img, k_lbl, k_img2 = jax.random.split(key, 3)

    mean = (0.485 * 255.0, 0.456 * 255.0, 0.406 * 255.0)
    std = (0.229 * 255.0, 0.224 * 255.0, 0.225 * 255.0)
    mean_arr = jnp.asarray(mean).reshape(1, 1, 3)
    std_arr = jnp.asarray(std).reshape(1, 1, 3)

    # Case 1: 8-bit PIL-style HWC image (lane-dense 384-wide flat view path).
    H, W, C = 16, 16, 3
    image = jax.random.randint(k_img, (H, W, C), 0, 256, dtype=jnp.int32).astype(
        jnp.uint8
    )
    label = jax.random.randint(k_lbl, (H, W), 0, 21, dtype=jnp.int32)

    out_img, out_lbl = normalize(image, label, mean, std)
    out_img = jax.block_until_ready(out_img)
    out_lbl = jax.block_until_ready(out_lbl)

    ref = (image.astype(jnp.float32) - mean_arr) / std_arr
    assert out_img.shape == (H, W, C) and out_img.dtype == jnp.float32
    assert jnp.allclose(out_img, ref, rtol=1e-5, atol=1e-5)
    assert (out_lbl == label).all()

    # Case 2: awkward width (exercises the masked-store fallback path).
    H2, W2 = 12, 43
    image2 = jax.random.uniform(k_img2, (H2, W2, C), dtype=jnp.float32) * 255.0
    out_img2, _ = normalize(image2, label, mean, std)
    out_img2 = jax.block_until_ready(out_img2)
    ref2 = (image2.astype(jnp.float32) - mean_arr) / std_arr
    assert jnp.allclose(out_img2, ref2, rtol=1e-5, atol=1e-5)

    print("KERNEL_OK")
</pallas_src>

<mosaic_0001>
module attributes {stable_mosaic.version = 11 : i64} {
  func.func @_normalize_kernel(%arg0: i32, %arg1: memref<2x384xi8, #tpu.memory_space<vmem>>, %arg2: memref<1x384xf32, #tpu.memory_space<vmem>>, %arg3: memref<1x384xf32, #tpu.memory_space<vmem>>, %arg4: memref<2x384xf32, #tpu.memory_space<vmem>>) attributes {dimension_semantics = [#tpu.dimension_semantics<parallel>], iteration_bounds = array<i64: 1>, scalar_prefetch = 0 : i64, scratch_operands = 0 : i64, tpu.core_type = #tpu.core_type<tc>, window_params = [{transform_indices = @transform_0, window_bounds = array<i64: 2, 384>}, {pipeline_mode = #tpu.pipeline_mode<synchronous>, transform_indices = @transform_1, window_bounds = array<i64: 1, 384>}, {pipeline_mode = #tpu.pipeline_mode<synchronous>, transform_indices = @transform_2, window_bounds = array<i64: 1, 384>}, {transform_indices = @transform_3, window_bounds = array<i64: 2, 384>}]} {
    %c0 = arith.constant 0 : index
    %c0_0 = arith.constant 0 : index
    %0 = vector.load %arg1[%c0, %c0_0] : memref<2x384xi8, #tpu.memory_space<vmem>>, vector<2x384xi8>
    %1 = arith.uitofp %0 : vector<2x384xi8> to vector<2x384xf32>
    %c0_1 = arith.constant 0 : index
    %c0_2 = arith.constant 0 : index
    %2 = vector.load %arg2[%c0_1, %c0_2] : memref<1x384xf32, #tpu.memory_space<vmem>>, vector<1x384xf32>
    %3 = vector.broadcast %2 : vector<1x384xf32> to vector<2x384xf32>
    %4 = arith.subf %1, %3 : vector<2x384xf32>
    %c0_3 = arith.constant 0 : index
    %c0_4 = arith.constant 0 : index
    %5 = vector.load %arg3[%c0_3, %c0_4] : memref<1x384xf32, #tpu.memory_space<vmem>>, vector<1x384xf32>
    %6 = vector.broadcast %5 : vector<1x384xf32> to vector<2x384xf32>
    %7 = arith.mulf %4, %6 : vector<2x384xf32>
    %c0_5 = arith.constant 0 : index
    %c0_6 = arith.constant 0 : index
    %8 = vector.load %arg4[%c0_5, %c0_6] : memref<2x384xf32, #tpu.memory_space<vmem>>, vector<2x384xf32>
    tpu.vector_store %arg4[%c0_5, %c0_6], %7 {strides = array<i32>} : memref<2x384xf32, #tpu.memory_space<vmem>>, vector<2x384xf32>,
    return
  }
  func.func @transform_0(%arg0: i32) -> (i32, i32) {
    %c0_i32 = arith.constant 0 : i32
    %c0_i32_0 = arith.constant 0 : i32
    return %arg0, %c0_i32 : i32, i32
  }
  func.func @transform_1(%arg0: i32) -> (i32, i32) {
    %c0_i32 = arith.constant 0 : i32
    %c0_i32_0 = arith.constant 0 : i32
    %c0_i32_1 = arith.constant 0 : i32
    return %c0_i32, %c0_i32_0 : i32, i32
  }
  func.func @transform_2(%arg0: i32) -> (i32, i32) {
    %c0_i32 = arith.constant 0 : i32
    %c0_i32_0 = arith.constant 0 : i32
    %c0_i32_1 = arith.constant 0 : i32
    return %c0_i32, %c0_i32_0 : i32, i32
  }
  func.func @transform_3(%arg0: i32) -> (i32, i32) {
    %c0_i32 = arith.constant 0 : i32
    %c0_i32_0 = arith.constant 0 : i32
    return %arg0, %c0_i32 : i32, i32
  }
}

</mosaic_0001>

<llo_original>
// kernel: tpu_custom_call.1
$region0: #{tpu_custom_call.1}
  #allocation0 [shape = 'u32[]', space=smem, size = 0x4, offset = 0x4, fixed_abs, tag = 'smem constant byte address 0x4 - core index']
  #allocation1 [shape = 'u32[144,128]{1,0:T(1,128)}', space=vmem, size = 0x12000, scoped, tag = 'internal scratch']
  %s0 = inlined_call_operand.hbm [shape: u8[2,384], index: 0, kind: input, shape index: {}]
  %s1 = inlined_call_operand.hbm [shape: f32[1,384], index: 1, kind: input, shape index: {}]
  %s2 = inlined_call_operand.vmem [shape: f32[1,384], index: 2, kind: input, shape index: {}]
  %s3 = inlined_call_operand.hbm [shape: f32[2,384], index: 3, kind: output, shape index: {}]
  %s4 = sld [smem:[#allocation0]]
  $region30: #{tpu_custom_call.1} parent=0
    _
  %s6 = ssub.s32 1, %s4
  %s7 = scalar_select 0, %s6, %s4
  $region1: #{tpu_custom_call.1} parent=0
    #allocation2 [shape = 'u8[1536]{0}', space=vmem, size = 0x800, scoped, tag = 'input window, operand 0, single buffered']
    #allocation3 [shape = 's32[1]{0}', space=sflag, size = 0x4, scoped, tag = 'scoped memory for tpu_custom_call.1']
    #allocation4 [shape = 's32[1]{0}', space=sflag, size = 0x4, scoped, tag = 'scoped memory for tpu_custom_call.1']
    #allocation5 [shape = 'u8[1536]{0}', space=vmem, size = 0x800, scoped, tag = 'input window, operand 1, single buffered']
    #allocation6 [shape = 's32[1]{0}', space=sflag, size = 0x4, scoped, tag = 'scoped memory for tpu_custom_call.1']
    #allocation7 [shape = 'u8[3072]{0}', space=vmem, size = 0xc00, scoped, tag = 'output window, operand 0, single buffered']
    %8 = vsyncpa [#allocation3], 0
    %9 = vsyncpa [#allocation6], 0
    %10 = vsyncpa [#allocation4], 0
    // Predicated region
    $region2: #{tpu_custom_call.1} parent=1 // pred_check
      _
    $region3: #{tpu_custom_call.1} parent=1 // pred_check_branch
      %12 = sbr.rel (0) target = $region5
    $region4: #{tpu_custom_call.1} parent=1 // pred_region
      %s14 = ssub.s32 48, 48
      %15 = vsyncadd [#allocation3], %s14
      %s17 = sshll.u32 [#allocation2], 4
      %s18 = int_to_ptr.vmem [resolvable:$true] %s17
      %20 = dma.hbm_to_vmem [thread:$0]  %s0, 48, %s18, [#allocation3]
    $region5: #{tpu_custom_call.1} parent=1 // pred_fallthru
      _
    // Predicated region
    $region6: #{tpu_custom_call.1} parent=1 // pred_check
      _
    $region7: #{tpu_custom_call.1} parent=1 // pred_check_branch
      %22 = sbr.rel (0) target = $region9
    $region8: #{tpu_custom_call.1} parent=1 // pred_region
      %s24 = ssub.s32 48, 48
      %25 = vsyncadd [#allocation6], %s24
      %s27 = sshll.u32 [#allocation5], 4
      %s28 = int_to_ptr.vmem [resolvable:$true] %s27
      %30 = dma.hbm_to_vmem [thread:$0]  %s1, 48, %s28, [#allocation6]
    $region9: #{tpu_custom_call.1} parent=1 // pred_fallthru
      _
    // Predicated region
    $region10: #{tpu_custom_call.1} parent=1 // pred_check
      _
    $region11: #{tpu_custom_call.1} parent=1 // pred_check_branch
      %32 = sbr.rel (0) target = $region13
    $region12: #{tpu_custom_call.1} parent=1 // pred_region
      _
    $region13: #{tpu_custom_call.1} parent=1 // pred_fallthru
      _
    // Predicated region
    $region14: #{tpu_custom_call.1} parent=1 // pred_check
      _
    $region15: #{tpu_custom_call.1} parent=1 // pred_check_branch
      %34 = sbr.rel (0) target = $region17
    $region16: #{tpu_custom_call.1} parent=1 // pred_region
      %35 = dma.done [#allocation3], 48
    $region17: #{tpu_custom_call.1} parent=1 // pred_fallthru
      _
    // Predicated region
    $region18: #{tpu_custom_call.1} parent=1 // pred_check
      _
    $region19: #{tpu_custom_call.1} parent=1 // pred_check_branch
      %37 = sbr.rel (0) target = $region21
    $region20: #{tpu_custom_call.1} parent=1 // pred_region
      %38 = dma.done [#allocation6], 48
    $region21: #{tpu_custom_call.1} parent=1 // pred_fallthru
      _
    %v39 = vld [vmem:[#allocation2] sm:$0x7]
    %v40 = vunpack.c.0.s8 %v39
    %v41 = vunpack.c.1.s8 %v39
    %v42 = vand.u32 %v40, 255
    %v43 = vand.u32 %v41, 255
    %v44 = vcvt.s32.f32 %v42
    %v45 = vcvt.s32.f32 %v43
    %v46 = vld [vmem:[#allocation5] sm:$0x7]
    %v48 = vlaneseq
    %v49 = vshrl.u32 %v48, 7
    %v50 = vsub.s32 0, %v49
    %v51 = vrot.slane %v46, %v50
    %v52 = vlaneseq
    %v53 = vshrl.u32 %v52, 7
    %v54 = vsub.s32 1, %v53
    %v55 = vrot.slane %v46, %v54
    %v56 = vlaneseq
    %v57 = vshrl.u32 %v56, 7
    %v58 = vsub.s32 2, %v57
    %v59 = vrot.slane %v46, %v58
    %v61 = vcombine.low %v51, %v55
    %v63 = vsub.f32 %v44, %v61
    %v64 = vsub.f32 %v45, %v59
    %v65 = vld [vmem:[%s2] sm:$0x7]
    %v67 = vlaneseq
    %v68 = vshrl.u32 %v67, 7
    %v69 = vsub.s32 0, %v68
    %v70 = vrot.slane %v65, %v69
    %v71 = vlaneseq
    %v72 = vshrl.u32 %v71, 7
    %v73 = vsub.s32 1, %v72
    %v74 = vrot.slane %v65, %v73
    %v75 = vlaneseq
    %v76 = vshrl.u32 %v75, 7
    %v77 = vsub.s32 2, %v76
    %v78 = vrot.slane %v65, %v77
    %v80 = vcombine.low %v70, %v74
    %v82 = vmul.f32 %v63, %v80
    %v83 = vmul.f32 %v64, %v78
    %v87 = vunpack.c.l.s4 1983009808
    %v88 = vunpack.c.0.s8 %v87
    %v89 = vlaneseq
    %v90 = vshrl.u32 %v89, 7
    %v91 = vsub.s32 %v88, %v90
    %v92 = vrot.slane %v82, %v91
    %v94 = vunpack.c.l.s4 1983009808
    %v95 = vunpack.c.0.s8 %v94
    %v96 = vlaneseq
    %v97 = vshrl.u32 %v96, 7
    %v98 = vsub.s32 %v95, %v97
    %v99 = vrot.slane %v83, %v98
    %v100 = vcombine.low %v92, %v99
    %102 = vst [vmem:[#allocation7] sm:$0x3f] %v100
    // Predicated region
    $region22: #{tpu_custom_call.1} parent=1 // pred_check
      _
    $region23: #{tpu_custom_call.1} parent=1 // pred_check_branch
      %104 = sbr.rel (0) target = $region25
    $region24: #{tpu_custom_call.1} parent=1 // pred_region
      %s106 = ssub.s32 96, 96
      %107 = vsyncadd [#allocation4], %s106
      %s109 = sshll.u32 [#allocation7], 4
      %s110 = int_to_ptr.vmem [resolvable:$true] %s109
      %112 = dma.vmem_to_hbm [thread:$0]  %s110, 96, %s3, [#allocation4]
    $region25: #{tpu_custom_call.1} parent=1 // pred_fallthru
      _
    // Predicated region
    $region26: #{tpu_custom_call.1} parent=1 // pred_check
      _
    $region27: #{tpu_custom_call.1} parent=1 // pred_check_branch
      %114 = sbr.rel (0) target = $region29
    $region28: #{tpu_custom_call.1} parent=1 // pred_region
      %115 = dma.done [#allocation4], 96
    $region29: #{tpu_custom_call.1} parent=1 // pred_fallthru
      _
    %116 = vsyncpa [#allocation3], 1
    %117 = vsyncpa [#allocation6], 1
    %118 = vsyncpa [#allocation4], 1

</llo_original>
